<compile_context>
chip_gen: v7x
topology: tpu7x:2x2x1
jax: 0.10.0
libtpu: 0.0.40
codegen_flags: <defaults>
</compile_context>

<pallas_src>
import jax
import jax.numpy as jnp
from jax.experimental import pallas as pl
from jax.experimental.pallas import tpu as pltpu


def _bbox_head_kernel(w_ref, x_ref, b_ref, o_ref):
    # w_ref: (C_out, C_in), x_ref: (C_in, T), b_ref: (C_out, 1), o_ref: (C_out, T)
    acc = jnp.dot(w_ref[...], x_ref[...], preferred_element_type=jnp.float32)
    o_ref[...] = (acc + b_ref[...]).astype(o_ref.dtype)


def bbox_head_forward(x_nchw, weight, bias, num_anchors=3,
                      tile_hw=2048, compute_dtype=None):
    """x_nchw: (N, C_in, H, W); weight: (C_out, C_in, 1, 1); bias: (C_out,)."""
    N, C_in, H, W = x_nchw.shape
    C_out = weight.shape[0]
    assert C_out == num_anchors * 4
    HW = H * W

    # Free reshapes (data is already contiguous in this layout) — no HBM transpose.
    x3d = x_nchw.reshape(N, C_in, HW)               # (N, C_in, HW)
    w_mat = weight.reshape(C_out, C_in)             # (C_out, C_in)
    b_col = bias.reshape(C_out, 1).astype(jnp.float32)

    out_dtype = x_nchw.dtype
    if compute_dtype is not None:
        x3d = x3d.astype(compute_dtype)
        w_mat = w_mat.astype(compute_dtype)

    # Pixel-tile size: either the full HW (always layout-legal) or a multiple
    # of 128 (lane-dense blocks; last partial tile is masked by Pallas).
    if HW <= tile_hw:
        T = HW
    else:
        T = tile_hw
        assert T % 128 == 0, "tile_hw must be a multiple of 128"
    n_tiles = pl.cdiv(HW, T)

    y3d = pl.pallas_call(
        _bbox_head_kernel,
        out_shape=jax.ShapeDtypeStruct((N, C_out, HW), out_dtype),
        grid_spec=pltpu.PrefetchScalarGridSpec(
            num_scalar_prefetch=0,
            grid=(N, n_tiles),
            in_specs=[
                # Weight / bias: constant index_map -> stay resident in VMEM.
                pl.BlockSpec((C_out, C_in), lambda n, j: (0, 0)),
                # Activation: one (C_in, T) channels-first slab per grid cell.
                pl.BlockSpec((None, C_in, T), lambda n, j: (n, 0, j)),
                pl.BlockSpec((C_out, 1), lambda n, j: (0, 0)),
            ],
            out_specs=pl.BlockSpec((None, C_out, T), lambda n, j: (n, 0, j)),
        ),
        compiler_params=pltpu.CompilerParams(
            dimension_semantics=("parallel", "parallel")),
    )(w_mat, x3d, b_col)

    # Small-output glue: (N, C_out, HW) -> (N, HW, C_out) -> (N, HW*A, 4).
    # This matches PyTorch's permute(0,2,3,1).view(N, -1, 4) ordering.
    return jnp.transpose(y3d, (0, 2, 1)).reshape(N, HW * num_anchors, 4)


if __name__ == "__main__":
    key = jax.random.PRNGKey(0)
    k_x, k_w, k_b = jax.random.split(key, 3)

    # Small shapes consistent with the module (in_channels scaled down).
    N, C_in, H, W = 2, 64, 32, 32
    num_anchors = 3
    C_out = num_anchors * 4

    x = jax.random.normal(k_x, (N, C_in, H, W), dtype=jnp.float32)
    # Conv2d 1x1 weight shape: (C_out, C_in, 1, 1).
    weight = jax.random.normal(k_w, (C_out, C_in, 1, 1), dtype=jnp.float32) * 0.05
    bias = jax.random.normal(k_b, (C_out,), dtype=jnp.float32) * 0.01

    # tile_hw=512 on HW=1024 exercises the tiled (N, n_tiles) = (2, 2) grid.
    out = bbox_head_forward(x, weight, bias, num_anchors=num_anchors, tile_hw=512)
    jax.block_until_ready(out)

    # Sanity check vs. plain-JAX reference of the same math.
    ref = jnp.einsum('nchw,oc->nhwo', x, weight.reshape(C_out, C_in)) + bias
    ref = ref.reshape(N, H * W * num_anchors, 4)
    assert out.shape == (N, H * W * num_anchors, 4)
    assert jnp.allclose(out, ref, atol=1e-4, rtol=1e-4)

    print("KERNEL_OK")
</pallas_src>

<mosaic_0001>
module attributes {stable_mosaic.version = 11 : i64} {
  func.func @_bbox_head_kernel(%arg0: i32, %arg1: i32, %arg2: memref<12x64xf32, #tpu.memory_space<vmem>>, %arg3: memref<1x64x512xf32, #tpu.memory_space<vmem>>, %arg4: memref<12x1xf32, #tpu.memory_space<vmem>>, %arg5: memref<1x12x512xf32, #tpu.memory_space<vmem>>) attributes {dimension_semantics = [#tpu.dimension_semantics<parallel>, #tpu.dimension_semantics<parallel>], iteration_bounds = array<i64: 2, 2>, scalar_prefetch = 0 : i64, scratch_operands = 0 : i64, tpu.core_type = #tpu.core_type<tc>, window_params = [{pipeline_mode = #tpu.pipeline_mode<synchronous>, transform_indices = @transform_0, window_bounds = array<i64: 12, 64>}, {transform_indices = @transform_1, window_bounds = array<i64: 1, 64, 512>}, {pipeline_mode = #tpu.pipeline_mode<synchronous>, transform_indices = @transform_2, window_bounds = array<i64: 12, 1>}, {transform_indices = @transform_3, window_bounds = array<i64: 1, 12, 512>}]} {
    %c0 = arith.constant 0 : index
    %c0_0 = arith.constant 0 : index
    %0 = vector.load %arg2[%c0, %c0_0] : memref<12x64xf32, #tpu.memory_space<vmem>>, vector<12x64xf32>
    %c0_1 = arith.constant 0 : index
    %c0_2 = arith.constant 0 : index
    %c0_3 = arith.constant 0 : index
    %1 = vector.load %arg3[%c0_1, %c0_2, %c0_3] : memref<1x64x512xf32, #tpu.memory_space<vmem>>, vector<1x64x512xf32>
    %2 = vector.shape_cast %1 : vector<1x64x512xf32> to vector<64x512xf32>
    %cst = arith.constant dense<0.000000e+00> : vector<12x512xf32>
    %3 = tpu.matmul %0, %2, %cst {dimension_numbers = #tpu.dot_dimension_numbers<[1], [0], [0], [1], [0, 0, 1, 1], [], []>} : vector<12x64xf32>, vector<64x512xf32>, vector<12x512xf32> -> vector<12x512xf32>
    %c0_4 = arith.constant 0 : index
    %c0_5 = arith.constant 0 : index
    %4 = vector.load %arg4[%c0_4, %c0_5] : memref<12x1xf32, #tpu.memory_space<vmem>>, vector<12x1xf32>
    %5 = vector.broadcast %4 : vector<12x1xf32> to vector<12x512xf32>
    %6 = arith.addf %3, %5 : vector<12x512xf32>
    %c0_6 = arith.constant 0 : index
    %c0_7 = arith.constant 0 : index
    %c0_8 = arith.constant 0 : index
    %7 = vector.load %arg5[%c0_6, %c0_7, %c0_8] : memref<1x12x512xf32, #tpu.memory_space<vmem>>, vector<1x12x512xf32>
    %8 = vector.shape_cast %7 : vector<1x12x512xf32> to vector<12x512xf32>
    %9 = vector.shape_cast %6 : vector<12x512xf32> to vector<1x12x512xf32>
    tpu.vector_store %arg5[%c0_6, %c0_7, %c0_8], %9 {strides = array<i32>} : memref<1x12x512xf32, #tpu.memory_space<vmem>>, vector<1x12x512xf32>,
    return
  }
  func.func @transform_0(%arg0: i32, %arg1: i32) -> (i32, i32) {
    %c0_i32 = arith.constant 0 : i32
    %c0_i32_0 = arith.constant 0 : i32
    %c0_i32_1 = arith.constant 0 : i32
    return %c0_i32, %c0_i32_0 : i32, i32
  }
  func.func @transform_1(%arg0: i32, %arg1: i32) -> (i32, i32, i32) {
    %c0_i32 = arith.constant 0 : i32
    %c0_i32_0 = arith.constant 0 : i32
    return %arg0, %c0_i32, %arg1 : i32, i32, i32
  }
  func.func @transform_2(%arg0: i32, %arg1: i32) -> (i32, i32) {
    %c0_i32 = arith.constant 0 : i32
    %c0_i32_0 = arith.constant 0 : i32
    %c0_i32_1 = arith.constant 0 : i32
    return %c0_i32, %c0_i32_0 : i32, i32
  }
  func.func @transform_3(%arg0: i32, %arg1: i32) -> (i32, i32, i32) {
    %c0_i32 = arith.constant 0 : i32
    %c0_i32_0 = arith.constant 0 : i32
    return %arg0, %c0_i32, %arg1 : i32, i32, i32
  }
}

</mosaic_0001>

<llo_original>
// kernel: tpu_custom_call.1
$region0: #{tpu_custom_call.1}
  #allocation0 [shape = 'u32[]', space=smem, size = 0x4, offset = 0x4, fixed_abs, tag = 'smem constant byte address 0x4 - core index']
  #allocation1 [shape = 'u32[144,128]{1,0:T(1,128)}', space=vmem, size = 0x12000, scoped, tag = 'internal scratch']
  %s0 = inlined_call_operand.vmem [shape: f32[12,64], index: 0, kind: input, shape index: {}]
  %s1 = inlined_call_operand.hbm [shape: f32[2,64,1024], index: 1, kind: input, shape index: {}]
  %s2 = inlined_call_operand.vmem [shape: f32[12,1], index: 2, kind: input, shape index: {}]
  %s3 = inlined_call_operand.vmem [shape: f32[2,12,1024], index: 3, kind: output, shape index: {}]
  %s4 = sld [smem:[#allocation0]]
  $region68: #{tpu_custom_call.1} parent=0
    _
  %s6 = ssub.s32 1, %s4
  %s7 = scalar_select 0, %s6, %s4
  $region1: #{tpu_custom_call.1} parent=0
    #allocation2 [shape = 'u8[262144]{0}', space=vmem, size = 0x40000, scoped, tag = 'input window, operand 1']
    #allocation3 [shape = 's32[2]{0}', space=sflag, size = 0x8, scoped, tag = 'scoped memory for tpu_custom_call.1']
    #allocation4 [shape = 'u8[65536]{0}', space=vmem, size = 0x10000, scoped, tag = 'output window, operand 0']
    %8 = vsyncpa [#allocation3], 0
    %s9 = scalar_lea.sflag [#allocation3], 1
    %10 = vsyncpa %s9, 0
    loop: start=0, step=1, limit=6
    $region2: #{tpu_custom_call.1} parent=1 // loop_pre_header
      _
    $region3: #{tpu_custom_call.1} parent=1 // loop_header
      %s12 = sphi 0, %s16
      %p13 = scmp.ge.s32.totalorder %s12, 6
      %s19 = sphi 0, %s31
      %s20 = sphi 0, %s27
      %s21 = sphi 0, %s19
      %s22 = sphi 0, %s20
      %s23 = sphi 0, %s21
      %s24 = sphi 0, %s22
      %s32 = sphi 0, %s32
      %s34 = sphi 0, %s32
      %s35 = sphi 0, %s34
      %s49 = sphi 0, %s35
      %s57 = sphi 0, %s59
      %s60 = sphi 0, %s57
      %s61 = sphi 0, %s60
      %s77 = sphi 0, %s61
      %s81 = sphi 0, %s81
      %s83 = sphi 0, %s81
      %s84 = sphi 0, %s83
      %s98 = sphi 0, %s84
      %s106 = sphi 0, %s108
      %s109 = sphi 0, %s106
      %s110 = sphi 0, %s109
      %s126 = sphi 0, %s110
    $region4: #{tpu_custom_call.1} parent=1 // loop_header_branch
      %15 = sbr.rel (%p13) target = $region8
    $region5: #{tpu_custom_call.1} parent=1 // loop_body
      %s17 = ssub.s32 %s12, 1
      %s18 = ssub.s32 %s12, 2
      %s25 = sadd.s32 1, %s20
      %p26 = scmp.ge.s32.totalorder %s25, 2
      %s27 = scalar_select %p26, 0, %s25
      %s28 = sadd.s32 1, %s19
      %s29 = scalar_select %p26, %s28, %s19
      %p30 = scmp.ge.s32.totalorder %s29, 2
      %s31 = scalar_select %p30, 0, %s29
      %s33 = sadd.s32 %s32, 1
      %p36 = scmp.eq.s32.totalorder %s12, 3
      %p37 = scmp.ne.s32.totalorder %s32, %s34
      %p38 = scmp.eq.s32.totalorder %s12, 0
      %p39 = por %p37, %p38
      %p40 = scmp.ne.s32.totalorder %s32, %s34
      %p41 = scmp.eq.s32.totalorder %s17, 3
      %p42 = por %p40, %p41
      %p43 = scmp.ne.s32.totalorder %s34, %s35
      %p44 = scmp.eq.s32.totalorder %s17, 0
      %p45 = por %p43, %p44
      %p46 = scmp.ne.s32.totalorder %s34, %s35
      %p47 = scmp.eq.s32.totalorder %s18, 3
      %p48 = por %p46, %p47
      %p50 = scmp.ne.s32.totalorder %s35, %s49
      %p51 = scmp.eq.s32.totalorder %s18, 0
      %p52 = por %p50, %p51
      %s53 = ssub.s32 %s19, %s31
      %s54 = ssub.s32 %s20, %s27
      %s55 = sor.u32 %s53, %s54
      %p56 = scmp.eq.s32.totalorder %s55, 0
      %s58 = sadd.s32 %s57, 1
      %s59 = scalar_select %p56, %s57, %s58
      %p62 = pneg %p56
      %p63 = scmp.eq.s32.totalorder %s12, 3
      %p64 = por %p62, %p63
      %p65 = scmp.ne.s32.totalorder %s57, %s60
      %p66 = scmp.eq.s32.totalorder %s12, 0
      %p67 = por %p65, %p66
      %p68 = scmp.ne.s32.totalorder %s57, %s60
      %p69 = scmp.eq.s32.totalorder %s17, 3
      %p70 = por %p68, %p69
      %p71 = scmp.ne.s32.totalorder %s60, %s61
      %p72 = scmp.eq.s32.totalorder %s17, 0
      %p73 = por %p71, %p72
      %p74 = scmp.ne.s32.totalorder %s60, %s61
      %p75 = scmp.eq.s32.totalorder %s18, 3
      %p76 = por %p74, %p75
      %p78 = scmp.ne.s32.totalorder %s61, %s77
      %p79 = scmp.eq.s32.totalorder %s18, 0
      %p80 = por %p78, %p79
      %s82 = sadd.s32 %s81, 1
      %p85 = scmp.eq.s32.totalorder %s12, 3
      %p86 = scmp.ne.s32.totalorder %s81, %s83
      %p87 = scmp.eq.s32.totalorder %s12, 0
      %p88 = por %p86, %p87
      %p89 = scmp.ne.s32.totalorder %s81, %s83
      %p90 = scmp.eq.s32.totalorder %s17, 3
      %p91 = por %p89, %p90
      %p92 = scmp.ne.s32.totalorder %s83, %s84
      %p93 = scmp.eq.s32.totalorder %s17, 0
      %p94 = por %p92, %p93
      %p95 = scmp.ne.s32.totalorder %s83, %s84
      %p96 = scmp.eq.s32.totalorder %s18, 3
      %p97 = por %p95, %p96
      %p99 = scmp.ne.s32.totalorder %s84, %s98
      %p100 = scmp.eq.s32.totalorder %s18, 0
      %p101 = por %p99, %p100
      %s102 = ssub.s32 %s19, %s31
      %s103 = ssub.s32 %s20, %s27
      %s104 = sor.u32 %s102, %s103
      %p105 = scmp.eq.s32.totalorder %s104, 0
      %s107 = sadd.s32 %s106, 1
      %s108 = scalar_select %p105, %s106, %s107
      %p111 = pneg %p105
      %p112 = scmp.eq.s32.totalorder %s12, 3
      %p113 = por %p111, %p112
      %p114 = scmp.ne.s32.totalorder %s106, %s109
      %p115 = scmp.eq.s32.totalorder %s12, 0
      %p116 = por %p114, %p115
      %p117 = scmp.ne.s32.totalorder %s106, %s109
      %p118 = scmp.eq.s32.totalorder %s17, 3
      %p119 = por %p117, %p118
      %p120 = scmp.ne.s32.totalorder %s109, %s110
      %p121 = scmp.eq.s32.totalorder %s17, 0
      %p122 = por %p120, %p121
      %p123 = scmp.ne.s32.totalorder %s109, %s110
      %p124 = scmp.eq.s32.totalorder %s18, 3
      %p125 = por %p123, %p124
      %p127 = scmp.ne.s32.totalorder %s110, %s126
      %p128 = scmp.eq.s32.totalorder %s18, 0
      %p129 = por %p127, %p128
      %p130 = scmp.le.s32.totalorder 1, %s12
      %p131 = scmp.lt.s32.totalorder %s12, 5
      %p132 = pnand %p130, %p131
      %p133 = pneg %p132
      // Predicated region
      $region9: #{tpu_custom_call.1} parent=5 // pred_check
        _
      $region10: #{tpu_custom_call.1} parent=5 // pred_check_branch
        %135 = sbr.rel (%p132) target = $region12
      $region11: #{tpu_custom_call.1} parent=5 // pred_region
        %s136 = ssub.s32 %s12, 1
        // Predicated region
        $region13: #{tpu_custom_call.1} parent=11 // pred_check
          %p137 = pneg %p45
        $region14: #{tpu_custom_call.1} parent=11 // pred_check_branch
          %139 = sbr.rel (%p137) target = $region16
        $region15: #{tpu_custom_call.1} parent=11 // pred_region
          _
        $region16: #{tpu_custom_call.1} parent=11 // pred_fallthru
          _
        // Predicated region
        $region17: #{tpu_custom_call.1} parent=11 // pred_check
          %p140 = pneg %p94
        $region18: #{tpu_custom_call.1} parent=11 // pred_check_branch
          %142 = sbr.rel (%p140) target = $region20
        $region19: #{tpu_custom_call.1} parent=11 // pred_region
          _
        $region20: #{tpu_custom_call.1} parent=11 // pred_fallthru
          _
      $region12: #{tpu_custom_call.1} parent=5 // pred_fallthru
        _
      %p143 = scmp.lt.s32.totalorder %s12, 4
      // Predicated region
      $region21: #{tpu_custom_call.1} parent=5 // pred_check
        %p144 = pneg %p143
      $region22: #{tpu_custom_call.1} parent=5 // pred_check_branch
        %146 = sbr.rel (%p144) target = $region24
      $region23: #{tpu_custom_call.1} parent=5 // pred_region
        // Predicated region
        $region25: #{tpu_custom_call.1} parent=23 // pred_check
          %p147 = pneg %p67
        $region26: #{tpu_custom_call.1} parent=23 // pred_check_branch
          %149 = sbr.rel (%p147) target = $region28
        $region27: #{tpu_custom_call.1} parent=23 // pred_region
          %s150 = sand.u32 %s57, 1
          %s151 = scalar_lea.sflag [#allocation3], %s150
          %s152 = sand.u32 %s57, 1
          %s153 = smul.addr %s152, 256
          %s154 = scalar_lea.vmem [#allocation2], %s153
          %s155 = smul.u32 4, %s20
          %s157 = ssub.s32 4096, 4096
          %158 = vsyncadd %s151, %s157
          %s159 = smul.addr %s19, 64
          %s160 = sadd.s32 %s155, %s159
          %s161 = smul.addr %s160, 128
          %s162 = scalar_lea.hbm %s1, %s161
          %s163 = sshll.u32 %s154, 4
          %s164 = int_to_ptr.vmem [resolvable:$true] %s163
          %169 = dma.hbm_to_vmem [thread:$0]  %s162, 4096, %s164, %s151, 1024, 512, 32
        $region28: #{tpu_custom_call.1} parent=23 // pred_fallthru
          _
      $region24: #{tpu_custom_call.1} parent=5 // pred_fallthru
        _
      %p170 = scmp.le.s32.totalorder 1, %s12
      %p171 = scmp.lt.s32.totalorder %s12, 5
      %p172 = pnand %p170, %p171
      %p173 = pneg %p172
      // Predicated region
      $region29: #{tpu_custom_call.1} parent=5 // pred_check
        _
      $region30: #{tpu_custom_call.1} parent=5 // pred_check_branch
        %175 = sbr.rel (%p172) target = $region32
      $region31: #{tpu_custom_call.1} parent=5 // pred_region
        %s176 = ssub.s32 %s12, 1
        %s177 = sand.u32 %s60, 1
        %s178 = scalar_lea.sflag [#allocation3], %s177
        %s179 = sand.u32 %s60, 1
        %s180 = smul.addr %s179, 256
        %s181 = scalar_lea.vmem [#allocation2], %s180
        // Predicated region
        $region33: #{tpu_custom_call.1} parent=31 // pred_check
          %p182 = pneg %p73
        $region34: #{tpu_custom_call.1} parent=31 // pred_check_branch
          %184 = sbr.rel (%p182) target = $region36
        $region35: #{tpu_custom_call.1} parent=31 // pred_region
          %185 = dma.done %s178, 4096
        $region36: #{tpu_custom_call.1} parent=31 // pred_fallthru
          _
        %p186 = pneg %p45
        %p187 = pneg %p42
        %s188 = sand.u32 %s60, 1
        %s189 = scalar_lea.sflag [#allocation3], %s188
        %s190 = sand.u32 %s60, 1
        %s191 = smul.addr %s190, 256
        %s192 = scalar_lea.vmem [#allocation2], %s191
        %p193 = pneg %p73
        %p194 = pneg %p70
        %p195 = pneg %p94
        %p196 = pneg %p91
        %p197 = pneg %p122
        %p198 = pneg %p119
        %s199 = sand.u32 %s109, 1
        %s200 = sand.u32 %s109, 1
        %s201 = smul.addr %s200, 64
        %s202 = scalar_lea.vmem [#allocation4], %s201
        %s203 = smul.u32 4, %s22
        %s204 = smul.u32 4, %s22
        %v205 = vld [vmem:[%s0] sm:$0xff]
        %v206 = vld [vmem:[%s0 + $0x8] sm:$0xf]
        %v207 = vld [vmem:[%s181] sm:$0xff]
        %v208 = vld [vmem:[%s181 + $0x8] sm:$0xff]
        %v209 = vld [vmem:[%s181 + $0x10] sm:$0xff]
        %v210 = vld [vmem:[%s181 + $0x18] sm:$0xff]
        %v211 = vld [vmem:[%s181 + $0x20] sm:$0xff]
        %v212 = vld [vmem:[%s181 + $0x28] sm:$0xff]
        %v213 = vld [vmem:[%s181 + $0x30] sm:$0xff]
        %v214 = vld [vmem:[%s181 + $0x38] sm:$0xff]
        %v215 = vld [vmem:[%s181 + $0x40] sm:$0xff]
        %v216 = vld [vmem:[%s181 + $0x48] sm:$0xff]
        %v217 = vld [vmem:[%s181 + $0x50] sm:$0xff]
        %v218 = vld [vmem:[%s181 + $0x58] sm:$0xff]
        %v219 = vld [vmem:[%s181 + $0x60] sm:$0xff]
        %v220 = vld [vmem:[%s181 + $0x68] sm:$0xff]
        %v221 = vld [vmem:[%s181 + $0x70] sm:$0xff]
        %v222 = vld [vmem:[%s181 + $0x78] sm:$0xff]
        %v223 = vld [vmem:[%s181 + $0x80] sm:$0xff]
        %v224 = vld [vmem:[%s181 + $0x88] sm:$0xff]
        %v225 = vld [vmem:[%s181 + $0x90] sm:$0xff]
        %v226 = vld [vmem:[%s181 + $0x98] sm:$0xff]
        %v227 = vld [vmem:[%s181 + $0xa0] sm:$0xff]
        %v228 = vld [vmem:[%s181 + $0xa8] sm:$0xff]
        %v229 = vld [vmem:[%s181 + $0xb0] sm:$0xff]
        %v230 = vld [vmem:[%s181 + $0xb8] sm:$0xff]
        %v231 = vld [vmem:[%s181 + $0xc0] sm:$0xff]
        %v232 = vld [vmem:[%s181 + $0xc8] sm:$0xff]
        %v233 = vld [vmem:[%s181 + $0xd0] sm:$0xff]
        %v234 = vld [vmem:[%s181 + $0xd8] sm:$0xff]
        %v235 = vld [vmem:[%s181 + $0xe0] sm:$0xff]
        %v236 = vld [vmem:[%s181 + $0xe8] sm:$0xff]
        %v237 = vld [vmem:[%s181 + $0xf0] sm:$0xff]
        %v238 = vld [vmem:[%s181 + $0xf8] sm:$0xff]
        %v239 = vld [vmem:[%s2] sm:$0xff]
        %v240 = vld [vmem:[%s2 + $0x8] sm:$0xf]
        %242 = vset.pattern.permute.xlu0 0
        %243 = vperm.xlu0 %242, %v239
        %v244 = vpop.permute.xlu0 %243
        %247 = vset.pattern.permute.xlu0 0
        %248 = vperm.xlu0 %247, %v240
        %v249 = vpop.permute.xlu0 %248
        %vm251 = vcmask 523264
        %v253 = vsel %vm251, %v205, 0
        %v256 = vsel %vm251, %v206, 0
        %258 = vmatprep.subr.mxu0 %v208
        %259 = vmatpush1.msra.mxu0 %v207
        %260 = vmatprep.subr.mxu0 %v212
        %261 = vmatpush1.msra.mxu0 %v211
        %262 = vmatprep.subr.mxu0 %v216
        %263 = vmatpush1.msra.mxu0 %v215
        %264 = vmatprep.subr.mxu0 %v220
        %265 = vmatpush1.msra.mxu0 %v219
        %266 = vmatprep.subr.mxu0 %v224
        %267 = vmatpush1.msra.mxu0 %v223
        %268 = vmatprep.subr.mxu0 %v228
        %269 = vmatpush1.msra.mxu0 %v227
        %270 = vmatprep.subr.mxu0 %v232
        %271 = vmatpush1.msra.mxu0 %v231
        %272 = vmatprep.subr.mxu0 %v236
        %273 = vmatpush1.msra.mxu0 %v235
        %274 = vmatprep.subr.mxu0 0.0
        %275 = vmatpush1.msra.mxu0 0.0
        %276 = vmatprep.subr.mxu0 0.0
        %277 = vmatpush1.msra.mxu0 0.0
        %278 = vmatprep.subr.mxu0 0.0
        %279 = vmatpush1.msra.mxu0 0.0
        %280 = vmatprep.subr.mxu0 0.0
        %281 = vmatpush1.msra.mxu0 0.0
        %282 = vmatprep.subr.mxu0 0.0
        %283 = vmatpush1.msra.mxu0 0.0
        %284 = vmatprep.subr.mxu0 0.0
        %285 = vmatpush1.msra.mxu0 0.0
        %286 = vmatprep.subr.mxu0 0.0
        %287 = vmatpush1.msra.mxu0 0.0
        %288 = vmatprep.subr.mxu0 0.0
        %289 = vmatpush1.msra.mxu0 0.0
        %290 = vmatprep.subr.mxu0 0.0
        %291 = vmatpush1.msra.mxu0 0.0
        %292 = vmatprep.subr.mxu0 0.0
        %293 = vmatpush1.msra.mxu0 0.0
        %294 = vmatprep.subr.mxu0 0.0
        %295 = vmatpush1.msra.mxu0 0.0
        %296 = vmatprep.subr.mxu0 0.0
        %297 = vmatpush1.msra.mxu0 0.0
        %298 = vmatprep.subr.mxu0 0.0
        %299 = vmatpush1.msra.mxu0 0.0
        %300 = vmatprep.subr.mxu0 0.0
        %301 = vmatpush1.msra.mxu0 0.0
        %302 = vmatprep.subr.mxu0 0.0
        %303 = vmatpush1.msra.mxu0 0.0
        %304 = vmatprep.subr.mxu0 0.0
        %305 = vmatpush1.msra.mxu0 0.0
        %306 = vmatprep.subr.mxu0 0.0
        %307 = vmatpush1.msra.mxu0 0.0
        %308 = vmatprep.subr.mxu0 0.0
        %309 = vmatpush1.msra.mxu0 0.0
        %310 = vmatprep.subr.mxu0 0.0
        %311 = vmatpush1.msra.mxu0 0.0
        %312 = vmatprep.subr.mxu0 0.0
        %313 = vmatpush1.msra.mxu0 0.0
        %314 = vmatprep.subr.mxu0 0.0
        %315 = vmatpush1.msra.mxu0 0.0
        %316 = vmatprep.subr.mxu0 0.0
        %317 = vmatpush1.msra.mxu0 0.0
        %318 = vmatprep.subr.mxu0 0.0
        %319 = vmatpush1.msra.mxu0 0.0
        %320 = vmatprep.subr.mxu0 0.0
        %321 = vmatpush1.msra.mxu0 0.0
        %322 = vmatprep.mubr.f32.mxu0 0.0
        %323 = vmatmul.mubr.f32.gmra.mrb[0].mxu0 %v253
        %v324 = vpop.f32.mrb[0].mxu0
        %v325 = vadd.f32 %v244, %v324
        %v326 = vpop.f32.mrb[0].mxu0
        %v327 = vadd.f32 %v244, %v326
        %328 = vmatprep.mubr.f32.mxu0 0.0
        %329 = vmatmul.mubr.f32.gmra.mrb[0].mxu0 %v256
        %v330 = vpop.f32.mrb[0].mxu0
        %v331 = vadd.f32 %v249, %v330
        %v332 = vpop.f32.mrb[0].mxu0
        %v333 = vadd.f32 %v249, %v332
        %334 = vdwg.mxu0
        %335 = vmatprep.subr.mxu0 %v210
        %336 = vmatpush1.msra.mxu0 %v209
        %337 = vmatprep.subr.mxu0 %v214
        %338 = vmatpush1.msra.mxu0 %v213
        %339 = vmatprep.subr.mxu0 %v218
        %340 = vmatpush1.msra.mxu0 %v217
        %341 = vmatprep.subr.mxu0 %v222
        %342 = vmatpush1.msra.mxu0 %v221
        %343 = vmatprep.subr.mxu0 %v226
        %344 = vmatpush1.msra.mxu0 %v225
        %345 = vmatprep.subr.mxu0 %v230
        %346 = vmatpush1.msra.mxu0 %v229
        %347 = vmatprep.subr.mxu0 %v234
        %348 = vmatpush1.msra.mxu0 %v233
        %349 = vmatprep.subr.mxu0 %v238
        %350 = vmatpush1.msra.mxu0 %v237
        %351 = vmatprep.subr.mxu0 0.0
        %352 = vmatpush1.msra.mxu0 0.0
        %353 = vmatprep.subr.mxu0 0.0
        %354 = vmatpush1.msra.mxu0 0.0
        %355 = vmatprep.subr.mxu0 0.0
        %356 = vmatpush1.msra.mxu0 0.0
        %357 = vmatprep.subr.mxu0 0.0
        %358 = vmatpush1.msra.mxu0 0.0
        %359 = vmatprep.subr.mxu0 0.0
        %360 = vmatpush1.msra.mxu0 0.0
        %361 = vmatprep.subr.mxu0 0.0
        %362 = vmatpush1.msra.mxu0 0.0
        %363 = vmatprep.subr.mxu0 0.0
        %364 = vmatpush1.msra.mxu0 0.0
        %365 = vmatprep.subr.mxu0 0.0
        %366 = vmatpush1.msra.mxu0 0.0
        %367 = vmatprep.subr.mxu0 0.0
        %368 = vmatpush1.msra.mxu0 0.0
        %369 = vmatprep.subr.mxu0 0.0
        %370 = vmatpush1.msra.mxu0 0.0
        %371 = vmatprep.subr.mxu0 0.0
        %372 = vmatpush1.msra.mxu0 0.0
        %373 = vmatprep.subr.mxu0 0.0
        %374 = vmatpush1.msra.mxu0 0.0
        %375 = vmatprep.subr.mxu0 0.0
        %376 = vmatpush1.msra.mxu0 0.0
        %377 = vmatprep.subr.mxu0 0.0
        %378 = vmatpush1.msra.mxu0 0.0
        %379 = vmatprep.subr.mxu0 0.0
        %380 = vmatpush1.msra.mxu0 0.0
        %381 = vmatprep.subr.mxu0 0.0
        %382 = vmatpush1.msra.mxu0 0.0
        %383 = vmatprep.subr.mxu0 0.0
        %384 = vmatpush1.msra.mxu0 0.0
        %385 = vmatprep.subr.mxu0 0.0
        %386 = vmatpush1.msra.mxu0 0.0
        %387 = vmatprep.subr.mxu0 0.0
        %388 = vmatpush1.msra.mxu0 0.0
        %389 = vmatprep.subr.mxu0 0.0
        %390 = vmatpush1.msra.mxu0 0.0
        %391 = vmatprep.subr.mxu0 0.0
        %392 = vmatpush1.msra.mxu0 0.0
        %393 = vmatprep.subr.mxu0 0.0
        %394 = vmatpush1.msra.mxu0 0.0
        %395 = vmatprep.subr.mxu0 0.0
        %396 = vmatpush1.msra.mxu0 0.0
        %397 = vmatprep.subr.mxu0 0.0
        %398 = vmatpush1.msra.mxu0 0.0
        %399 = vmatprep.mubr.f32.mxu0 0.0
        %400 = vmatmul.mubr.f32.gmra.mrb[0].mxu0 %v253
        %v401 = vpop.f32.mrb[0].mxu0
        %v402 = vadd.f32 %v244, %v401
        %v403 = vpop.f32.mrb[0].mxu0
        %v404 = vadd.f32 %v244, %v403
        %405 = vmatprep.mubr.f32.mxu0 0.0
        %406 = vmatmul.mubr.f32.gmra.mrb[0].mxu0 %v256
        %v407 = vpop.f32.mrb[0].mxu0
        %v408 = vadd.f32 %v249, %v407
        %v409 = vpop.f32.mrb[0].mxu0
        %v410 = vadd.f32 %v249, %v409
        %411 = vdwg.mxu0
        %412 = vst [vmem:[%s202] sm:$0xff] %v325
        %413 = vst [vmem:[%s202 + $0x8] sm:$0xff] %v327
        %414 = vst [vmem:[%s202 + $0x10] sm:$0xff] %v402
        %415 = vst [vmem:[%s202 + $0x18] sm:$0xff] %v404
        %416 = vst [vmem:[%s202 + $0x20] sm:$0xf] %v331
        %417 = vst [vmem:[%s202 + $0x28] sm:$0xf] %v333
        %418 = vst [vmem:[%s202 + $0x30] sm:$0xf] %v408
        %419 = vst [vmem:[%s202 + $0x38] sm:$0xf] %v410
        %s420 = sand.u32 %s109, 1
        %s421 = sand.u32 %s109, 1
        %s422 = smul.addr %s421, 64
        %s423 = scalar_lea.vmem [#allocation4], %s422
        // Predicated region
        $region37: #{tpu_custom_call.1} parent=31 // pred_check
          %p424 = pneg %p119
        $region38: #{tpu_custom_call.1} parent=31 // pred_check_branch
          %426 = sbr.rel (%p424) target = $region40
        $region39: #{tpu_custom_call.1} parent=31 // pred_region
          %s427 = smul.u32 4, %s22
          %s428 = smul.addr %s21, 16
          %s429 = sadd.s32 %s427, %s428
          %s430 = smul.addr %s429, 8
          %s431 = scalar_lea.vmem %s3, %s430
          // Predicated region
          $region41: #{tpu_custom_call.1} parent=39 // pred_check
            _
          $region42: #{tpu_custom_call.1} parent=39 // pred_check_branch
            %433 = sbr.rel (0) target = $region44
          $region43: #{tpu_custom_call.1} parent=39 // pred_region
            // Predicated region
            $region45: #{tpu_custom_call.1} parent=43 // pred_check
              _
            $region46: #{tpu_custom_call.1} parent=43 // pred_check_branch
              %435 = sbr.rel (0) target = $region48
            $region47: #{tpu_custom_call.1} parent=43 // pred_region
              loop: start=0, step=1, limit=1
              $region49: #{tpu_custom_call.1} parent=47 // loop_pre_header
                _
              $region50: #{tpu_custom_call.1} parent=47 // loop_header
                %s437 = sphi 0, %s441
                %p438 = scmp.ge.s32.totalorder %s437, 1
                %s442 = sphi %s423, %s423
                %s443 = sphi %s431, %s431
              $region51: #{tpu_custom_call.1} parent=47 // loop_header_branch
                %440 = sbr.rel (%p438) target = $region55
              $region52: #{tpu_custom_call.1} parent=47 // loop_body
                %v444 = vld [vmem:[%s442] sm:$0xff]
                %445 = vst [vmem:[%s443] sm:$0xff] %v444
                %v446 = vld [vmem:[%s442 + $0x8] sm:$0xff]
                %447 = vst [vmem:[%s443 + $0x8] sm:$0xff] %v446
                %v448 = vld [vmem:[%s442 + $0x10] sm:$0xff]
                %449 = vst [vmem:[%s443 + $0x10] sm:$0xff] %v448
                %v450 = vld [vmem:[%s442 + $0x18] sm:$0xff]
                %451 = vst [vmem:[%s443 + $0x18] sm:$0xff] %v450
                %v452 = vld [vmem:[%s442 + $0x20] sm:$0xff]
                %453 = vst [vmem:[%s443 + $0x40] sm:$0xff] %v452
                %v454 = vld [vmem:[%s442 + $0x28] sm:$0xff]
                %455 = vst [vmem:[%s443 + $0x48] sm:$0xff] %v454
                %v456 = vld [vmem:[%s442 + $0x30] sm:$0xff]
                %457 = vst [vmem:[%s443 + $0x50] sm:$0xff] %v456
                %v458 = vld [vmem:[%s442 + $0x38] sm:$0xff]
                %459 = vst [vmem:[%s443 + $0x58] sm:$0xff] %v458
              $region53: #{tpu_custom_call.1} parent=47 // loop_footer
                %s441 = sadd.s32 1, %s437
              $region54: #{tpu_custom_call.1} parent=47 // loop_footer_branch
                %436 = sbr.rel target = $region50
              $region55: #{tpu_custom_call.1} parent=47 // loop_exit
                _
            $region48: #{tpu_custom_call.1} parent=43 // pred_fallthru
              _
            // Predicated region
            $region56: #{tpu_custom_call.1} parent=43 // pred_check
              _
            $region57: #{tpu_custom_call.1} parent=43 // pred_check_branch
              %461 = sbr.rel target = $region59
            $region58: #{tpu_custom_call.1} parent=43 // pred_region
              _
            $region59: #{tpu_custom_call.1} parent=43 // pred_fallthru
              _
          $region44: #{tpu_custom_call.1} parent=39 // pred_fallthru
            _
          %462 = vnop
        $region40: #{tpu_custom_call.1} parent=31 // pred_fallthru
          _
      $region32: #{tpu_custom_call.1} parent=5 // pred_fallthru
        _
      %p463 = scmp.le.s32.totalorder 2, %s12
      // Predicated region
      $region60: #{tpu_custom_call.1} parent=5 // pred_check
        %p464 = pneg %p463
      $region61: #{tpu_custom_call.1} parent=5 // pred_check_branch
        %466 = sbr.rel (%p464) target = $region63
      $region62: #{tpu_custom_call.1} parent=5 // pred_region
        %s467 = ssub.s32 %s12, 2
        // Predicated region
        $region64: #{tpu_custom_call.1} parent=62 // pred_check
          %p468 = pneg %p125
        $region65: #{tpu_custom_call.1} parent=62 // pred_check_branch
          %470 = sbr.rel (%p468) target = $region67
        $region66: #{tpu_custom_call.1} parent=62 // pred_region
          %s471 = sand.u32 %s110, 1
          %s472 = sand.u32 %s110, 1
          %s473 = smul.addr %s472, 64
          %s474 = scalar_lea.vmem [#allocation4], %s473
        $region67: #{tpu_custom_call.1} parent=62 // pred_fallthru
          _
      $region63: #{tpu_custom_call.1} parent=5 // pred_fallthru
        _
    $region6: #{tpu_custom_call.1} parent=1 // loop_footer
      %s16 = sadd.s32 1, %s12
    $region7: #{tpu_custom_call.1} parent=1 // loop_footer_branch
      %11 = sbr.rel target = $region3
    $region8: #{tpu_custom_call.1} parent=1 // loop_exit
      _
    %475 = vsyncpa [#allocation3], 1
    %s476 = scalar_lea.sflag [#allocation3], 1
    %477 = vsyncpa %s476, 1

</llo_original>
